<compile_context>
chip_gen: v7x
topology: tpu7x:2x2x1
jax: 0.10.0
libtpu: 0.0.40
codegen_flags: <defaults>
</compile_context>

<pallas_src>
import functools

import jax
import jax.numpy as jnp
from jax.experimental import pallas as pl
from jax.experimental.pallas import tpu as pltpu

LANE = 128
SUBLANE = 8


def mlp_kernel(x_ref,
               w1_ref, b1_ref,
               w2_ref, b2_ref,
               w3_ref, b3_ref,
               w4_ref, b4_ref,
               o_ref):
    """Fused 4-layer MLP on one (TB, in_features) batch tile.

    x arrives f32 and is cast to bf16 in-kernel (VPU, hidden under the MXU
    work); weights are pre-converted bf16; accumulation is f32; biases are f32.
    All intermediates (h1..h3) live in vregs/VMEM — nothing round-trips to HBM.
    """
    h = x_ref[...].astype(w1_ref.dtype)

    h = jnp.dot(h, w1_ref[...], preferred_element_type=jnp.float32) + b1_ref[...]
    h = jnp.maximum(h, 0.0)

    h = jnp.dot(h.astype(w2_ref.dtype), w2_ref[...],
                preferred_element_type=jnp.float32) + b2_ref[...]
    h = jnp.maximum(h, 0.0)

    h = jnp.dot(h.astype(w3_ref.dtype), w3_ref[...],
                preferred_element_type=jnp.float32) + b3_ref[...]
    h = jnp.maximum(h, 0.0)

    h = jnp.dot(h.astype(w4_ref.dtype), w4_ref[...],
                preferred_element_type=jnp.float32) + b4_ref[...]
    o_ref[...] = h.astype(o_ref.dtype)


def _round_up(n, m):
    return ((n + m - 1) // m) * m


def prepare_params(params):
    """One-time conversion, OUTSIDE the per-call path: bf16 weights, f32 (1,N) biases."""
    prepped = []
    for w, b in params:
        prepped.append((jnp.asarray(w, jnp.bfloat16),
                        jnp.asarray(b, jnp.float32).reshape(1, -1)))
    return tuple(prepped)


@functools.partial(jax.jit, static_argnames=("batch_tile",))
def mlp_forward(x, params, *, batch_tile=2048):
    (w1, b1), (w2, b2), (w3, b3), (w4, b4) = params
    B, in_dim = x.shape
    out_size = w4.shape[1]

    # --- Batch tiling: largest tile that fits the batch (fewer grid steps ->
    #     less fixed per-step pipeline overhead), but guarantee >= 2 grid steps
    #     when the batch allows it so both v7x TensorCores get work under the
    #     "parallel" dimension semantics (no effect on single-TC v5e/v6e). ---
    TB = min(batch_tile, _round_up(B, SUBLANE))
    if B > SUBLANE and _round_up(B, TB) // TB < 2:
        TB = max(SUBLANE, _round_up(pl.cdiv(B, 2), SUBLANE))
    Bp = _round_up(B, TB)
    if Bp != B:
        x = jnp.pad(x, ((0, Bp - B), (0, 0)))
    grid = (Bp // TB,)

    def tiled(feat):
        return pl.BlockSpec((TB, feat), lambda i: (i, 0))

    def resident(shape):
        # Constant index_map -> block stays VMEM-resident across grid steps;
        # single-buffered since it is never re-fetched.
        return pl.BlockSpec(shape, lambda i: (0, 0), pipeline_mode=pl.Buffered(1))

    # --- Explicit VMEM budget so the resident-weight design stays portable
    #     (v5e default scoped limit is 16 MiB, v7x physical is 64 MiB). ---
    wb_bytes = sum(int(a.size) * a.dtype.itemsize
                   for a in (w1, b1, w2, b2, w3, b3, w4, b4))
    act_bytes = 2 * TB * (in_dim + out_size) * 4              # double-buffered x / out tiles (f32)
    inter_bytes = TB * (w1.shape[1] + w2.shape[1] + w3.shape[1]) * 4
    needed = wb_bytes + act_bytes + inter_bytes + (1 << 20)
    vmem_limit = int(min(64 << 20, max(32 << 20, 2 * needed)))

    # --- Advisory cost estimate: lets XLA overlap surrounding ops with the call. ---
    flops = 2 * Bp * sum(int(w.shape[0]) * int(w.shape[1]) for w in (w1, w2, w3, w4))
    bytes_accessed = Bp * in_dim * 4 + wb_bytes + Bp * out_size * 4

    out = pl.pallas_call(
        mlp_kernel,
        out_shape=jax.ShapeDtypeStruct((Bp, out_size), jnp.float32),
        grid=grid,
        in_specs=[
            tiled(in_dim),
            resident(w1.shape), resident(b1.shape),
            resident(w2.shape), resident(b2.shape),
            resident(w3.shape), resident(b3.shape),
            resident(w4.shape), resident(b4.shape),
        ],
        out_specs=tiled(out_size),
        compiler_params=pltpu.CompilerParams(
            dimension_semantics=("parallel",),
            vmem_limit_bytes=vmem_limit),
        cost_estimate=pl.CostEstimate(flops=flops, transcendentals=0,
                                      bytes_accessed=bytes_accessed),
    )(x, w1, b1, w2, b2, w3, b3, w4, b4)

    if Bp != B:
        out = out[:B]
    return out


def init_params(key, input_size, hidden_size, output_size):
    dims = [
        (input_size, hidden_size),
        (hidden_size, hidden_size * 4),
        (hidden_size * 4, hidden_size * 8),
        (hidden_size * 8, output_size),
    ]
    params = []
    for i, (fan_in, fan_out) in enumerate(dims):
        kw, kb = jax.random.split(jax.random.fold_in(key, i))
        bound = 1.0 / (fan_in ** 0.5)
        # Stored as (in, out); equals PyTorch nn.Linear weight (out, in) transposed.
        w = jax.random.uniform(kw, (fan_in, fan_out), jnp.float32, -bound, bound)
        b = jax.random.uniform(kb, (1, fan_out), jnp.float32, -bound, bound)
        params.append((w, b))
    return params


def reference_forward(x, params, compute_dtype=jnp.bfloat16):
    """Pure-JAX reference using the same bf16-operand / f32-accumulate recipe."""
    h = x.astype(compute_dtype)
    for i, (w, b) in enumerate(params):
        h = jnp.dot(h, w.astype(compute_dtype),
                    preferred_element_type=jnp.float32) + b.astype(jnp.float32)
        if i < len(params) - 1:
            h = jnp.maximum(h, 0.0)
            h = h.astype(compute_dtype)
    return h


def reference_forward_f32(x, params):
    h = x
    for i, (w, b) in enumerate(params):
        h = h @ w + b
        if i < len(params) - 1:
            h = jnp.maximum(h, 0.0)
    return h


if __name__ == "__main__":
    key = jax.random.PRNGKey(0)
    input_size, hidden_size, output_size = 16, 32, 10
    batch = 8

    kx, kp = jax.random.split(key)
    x = jax.random.normal(kx, (batch, input_size), jnp.float32)
    params = init_params(kp, input_size, hidden_size, output_size)
    prepped = prepare_params(params)   # one-time bf16/f32 conversion (not per call)

    out = jax.block_until_ready(mlp_forward(x, prepped))
    assert out.shape == (batch, output_size)

    # Tight check against a bf16-consistent reference (same operand rounding).
    ref_bf16 = reference_forward(x, params, compute_dtype=jnp.bfloat16)
    assert jnp.allclose(out, ref_bf16, atol=2e-3, rtol=2e-3), \
        float(jnp.max(jnp.abs(out - ref_bf16)))

    # Loose sanity check against the full-f32 PyTorch-equivalent forward.
    ref_f32 = reference_forward_f32(x, params)
    assert jnp.allclose(out, ref_f32, atol=5e-2, rtol=5e-2), \
        float(jnp.max(jnp.abs(out - ref_f32)))

    print("KERNEL_OK")
</pallas_src>

<mosaic_0001>
module attributes {stable_mosaic.version = 11 : i64} {
  func.func @mlp_kernel(%arg0: i32, %arg1: memref<8x16xf32, #tpu.memory_space<vmem>>, %arg2: memref<16x32xbf16, #tpu.memory_space<vmem>>, %arg3: memref<1x32xf32, #tpu.memory_space<vmem>>, %arg4: memref<32x128xbf16, #tpu.memory_space<vmem>>, %arg5: memref<1x128xf32, #tpu.memory_space<vmem>>, %arg6: memref<128x256xbf16, #tpu.memory_space<vmem>>, %arg7: memref<1x256xf32, #tpu.memory_space<vmem>>, %arg8: memref<256x10xbf16, #tpu.memory_space<vmem>>, %arg9: memref<1x10xf32, #tpu.memory_space<vmem>>, %arg10: memref<8x10xf32, #tpu.memory_space<vmem>>) attributes {dimension_semantics = [#tpu.dimension_semantics<parallel>], iteration_bounds = array<i64: 1>, scalar_prefetch = 0 : i64, scratch_operands = 0 : i64, tpu.core_type = #tpu.core_type<tc>, window_params = [{transform_indices = @transform_0, window_bounds = array<i64: 8, 16>}, {pipeline_mode = #tpu.pipeline_mode<synchronous>, transform_indices = @transform_1, window_bounds = array<i64: 16, 32>}, {pipeline_mode = #tpu.pipeline_mode<synchronous>, transform_indices = @transform_2, window_bounds = array<i64: 1, 32>}, {pipeline_mode = #tpu.pipeline_mode<synchronous>, transform_indices = @transform_3, window_bounds = array<i64: 32, 128>}, {pipeline_mode = #tpu.pipeline_mode<synchronous>, transform_indices = @transform_4, window_bounds = array<i64: 1, 128>}, {pipeline_mode = #tpu.pipeline_mode<synchronous>, transform_indices = @transform_5, window_bounds = array<i64: 128, 256>}, {pipeline_mode = #tpu.pipeline_mode<synchronous>, transform_indices = @transform_6, window_bounds = array<i64: 1, 256>}, {pipeline_mode = #tpu.pipeline_mode<synchronous>, transform_indices = @transform_7, window_bounds = array<i64: 256, 10>}, {pipeline_mode = #tpu.pipeline_mode<synchronous>, transform_indices = @transform_8, window_bounds = array<i64: 1, 10>}, {transform_indices = @transform_9, window_bounds = array<i64: 8, 10>}]} {
    %c0 = arith.constant 0 : index
    %c0_0 = arith.constant 0 : index
    %0 = vector.load %arg1[%c0, %c0_0] : memref<8x16xf32, #tpu.memory_space<vmem>>, vector<8x16xf32>
    %1 = arith.truncf %0 : vector<8x16xf32> to vector<8x16xbf16>
    %c0_1 = arith.constant 0 : index
    %c0_2 = arith.constant 0 : index
    %2 = vector.load %arg2[%c0_1, %c0_2] : memref<16x32xbf16, #tpu.memory_space<vmem>>, vector<16x32xbf16>
    %cst = arith.constant dense<0.000000e+00> : vector<8x32xf32>
    %3 = tpu.matmul %1, %2, %cst {dimension_numbers = #tpu.dot_dimension_numbers<[1], [0], [0], [1], [0, 0, 1, 1], [], []>} : vector<8x16xbf16>, vector<16x32xbf16>, vector<8x32xf32> -> vector<8x32xf32>
    %c0_3 = arith.constant 0 : index
    %c0_4 = arith.constant 0 : index
    %4 = vector.load %arg3[%c0_3, %c0_4] : memref<1x32xf32, #tpu.memory_space<vmem>>, vector<1x32xf32>
    %5 = vector.broadcast %4 : vector<1x32xf32> to vector<8x32xf32>
    %6 = arith.addf %3, %5 : vector<8x32xf32>
    %cst_5 = arith.constant 0.000000e+00 : f32
    %7 = vector.broadcast %cst_5 : f32 to vector<8x32xf32>
    %8 = arith.maximumf %6, %7 : vector<8x32xf32>
    %9 = arith.truncf %8 : vector<8x32xf32> to vector<8x32xbf16>
    %c0_6 = arith.constant 0 : index
    %c0_7 = arith.constant 0 : index
    %10 = vector.load %arg4[%c0_6, %c0_7] : memref<32x128xbf16, #tpu.memory_space<vmem>>, vector<32x128xbf16>
    %cst_8 = arith.constant dense<0.000000e+00> : vector<8x128xf32>
    %11 = tpu.matmul %9, %10, %cst_8 {dimension_numbers = #tpu.dot_dimension_numbers<[1], [0], [0], [1], [0, 0, 1, 1], [], []>} : vector<8x32xbf16>, vector<32x128xbf16>, vector<8x128xf32> -> vector<8x128xf32>
    %c0_9 = arith.constant 0 : index
    %c0_10 = arith.constant 0 : index
    %12 = vector.load %arg5[%c0_9, %c0_10] : memref<1x128xf32, #tpu.memory_space<vmem>>, vector<1x128xf32>
    %13 = vector.broadcast %12 : vector<1x128xf32> to vector<8x128xf32>
    %14 = arith.addf %11, %13 : vector<8x128xf32>
    %cst_11 = arith.constant 0.000000e+00 : f32
    %15 = vector.broadcast %cst_11 : f32 to vector<8x128xf32>
    %16 = arith.maximumf %14, %15 : vector<8x128xf32>
    %17 = arith.truncf %16 : vector<8x128xf32> to vector<8x128xbf16>
    %c0_12 = arith.constant 0 : index
    %c0_13 = arith.constant 0 : index
    %18 = vector.load %arg6[%c0_12, %c0_13] : memref<128x256xbf16, #tpu.memory_space<vmem>>, vector<128x256xbf16>
    %cst_14 = arith.constant dense<0.000000e+00> : vector<8x256xf32>
    %19 = tpu.matmul %17, %18, %cst_14 {dimension_numbers = #tpu.dot_dimension_numbers<[1], [0], [0], [1], [0, 0, 1, 1], [], []>} : vector<8x128xbf16>, vector<128x256xbf16>, vector<8x256xf32> -> vector<8x256xf32>
    %c0_15 = arith.constant 0 : index
    %c0_16 = arith.constant 0 : index
    %20 = vector.load %arg7[%c0_15, %c0_16] : memref<1x256xf32, #tpu.memory_space<vmem>>, vector<1x256xf32>
    %21 = vector.broadcast %20 : vector<1x256xf32> to vector<8x256xf32>
    %22 = arith.addf %19, %21 : vector<8x256xf32>
    %cst_17 = arith.constant 0.000000e+00 : f32
    %23 = vector.broadcast %cst_17 : f32 to vector<8x256xf32>
    %24 = arith.maximumf %22, %23 : vector<8x256xf32>
    %25 = arith.truncf %24 : vector<8x256xf32> to vector<8x256xbf16>
    %c0_18 = arith.constant 0 : index
    %c0_19 = arith.constant 0 : index
    %26 = vector.load %arg8[%c0_18, %c0_19] : memref<256x10xbf16, #tpu.memory_space<vmem>>, vector<256x10xbf16>
    %cst_20 = arith.constant dense<0.000000e+00> : vector<8x10xf32>
    %27 = tpu.matmul %25, %26, %cst_20 {dimension_numbers = #tpu.dot_dimension_numbers<[1], [0], [0], [1], [0, 0, 1, 1], [], []>} : vector<8x256xbf16>, vector<256x10xbf16>, vector<8x10xf32> -> vector<8x10xf32>
    %c0_21 = arith.constant 0 : index
    %c0_22 = arith.constant 0 : index
    %28 = vector.load %arg9[%c0_21, %c0_22] : memref<1x10xf32, #tpu.memory_space<vmem>>, vector<1x10xf32>
    %29 = vector.broadcast %28 : vector<1x10xf32> to vector<8x10xf32>
    %30 = arith.addf %27, %29 : vector<8x10xf32>
    %c0_23 = arith.constant 0 : index
    %c0_24 = arith.constant 0 : index
    %31 = vector.load %arg10[%c0_23, %c0_24] : memref<8x10xf32, #tpu.memory_space<vmem>>, vector<8x10xf32>
    tpu.vector_store %arg10[%c0_23, %c0_24], %30 {strides = array<i32>} : memref<8x10xf32, #tpu.memory_space<vmem>>, vector<8x10xf32>,
    return
  }
  func.func @transform_0(%arg0: i32) -> (i32, i32) {
    %c0_i32 = arith.constant 0 : i32
    %c0_i32_0 = arith.constant 0 : i32
    return %arg0, %c0_i32 : i32, i32
  }
  func.func @transform_1(%arg0: i32) -> (i32, i32) {
    %c0_i32 = arith.constant 0 : i32
    %c0_i32_0 = arith.constant 0 : i32
    %c0_i32_1 = arith.constant 0 : i32
    return %c0_i32, %c0_i32_0 : i32, i32
  }
  func.func @transform_2(%arg0: i32) -> (i32, i32) {
    %c0_i32 = arith.constant 0 : i32
    %c0_i32_0 = arith.constant 0 : i32
    %c0_i32_1 = arith.constant 0 : i32
    return %c0_i32, %c0_i32_0 : i32, i32
  }
  func.func @transform_3(%arg0: i32) -> (i32, i32) {
    %c0_i32 = arith.constant 0 : i32
    %c0_i32_0 = arith.constant 0 : i32
    %c0_i32_1 = arith.constant 0 : i32
    return %c0_i32, %c0_i32_0 : i32, i32
  }
  func.func @transform_4(%arg0: i32) -> (i32, i32) {
    %c0_i32 = arith.constant 0 : i32
    %c0_i32_0 = arith.constant 0 : i32
    %c0_i32_1 = arith.constant 0 : i32
    return %c0_i32, %c0_i32_0 : i32, i32
  }
  func.func @transform_5(%arg0: i32) -> (i32, i32) {
    %c0_i32 = arith.constant 0 : i32
    %c0_i32_0 = arith.constant 0 : i32
    %c0_i32_1 = arith.constant 0 : i32
    return %c0_i32, %c0_i32_0 : i32, i32
  }
  func.func @transform_6(%arg0: i32) -> (i32, i32) {
    %c0_i32 = arith.constant 0 : i32
    %c0_i32_0 = arith.constant 0 : i32
    %c0_i32_1 = arith.constant 0 : i32
    return %c0_i32, %c0_i32_0 : i32, i32
  }
  func.func @transform_7(%arg0: i32) -> (i32, i32) {
    %c0_i32 = arith.constant 0 : i32
    %c0_i32_0 = arith.constant 0 : i32
    %c0_i32_1 = arith.constant 0 : i32
    return %c0_i32, %c0_i32_0 : i32, i32
  }
  func.func @transform_8(%arg0: i32) -> (i32, i32) {
    %c0_i32 = arith.constant 0 : i32
    %c0_i32_0 = arith.constant 0 : i32
    %c0_i32_1 = arith.constant 0 : i32
    return %c0_i32, %c0_i32_0 : i32, i32
  }
  func.func @transform_9(%arg0: i32) -> (i32, i32) {
    %c0_i32 = arith.constant 0 : i32
    %c0_i32_0 = arith.constant 0 : i32
    return %arg0, %c0_i32 : i32, i32
  }
}

</mosaic_0001>

<llo_original>
// kernel: mlp_forward.1
$region0: #{mlp_forward.1}
  #allocation0 [shape = 'u32[]', space=smem, size = 0x4, offset = 0x4, fixed_abs, tag = 'smem constant byte address 0x4 - core index']
  #allocation1 [shape = 'u32[144,128]{1,0:T(1,128)}', space=vmem, size = 0x12000, scoped, tag = 'internal scratch']
  %s0 = inlined_call_operand.vmem [shape: f32[8,16], index: 0, kind: input, shape index: {}]
  %s1 = inlined_call_operand.hbm [shape: bf16[16,32], index: 1, kind: input, shape index: {}]
  %s2 = inlined_call_operand.hbm [shape: f32[1,32], index: 2, kind: input, shape index: {}]
  %s3 = inlined_call_operand.vmem [shape: bf16[32,128], index: 3, kind: input, shape index: {}]
  %s4 = inlined_call_operand.hbm [shape: f32[1,128], index: 4, kind: input, shape index: {}]
  %s5 = inlined_call_operand.vmem [shape: bf16[128,256], index: 5, kind: input, shape index: {}]
  %s6 = inlined_call_operand.vmem [shape: f32[1,256], index: 6, kind: input, shape index: {}]
  %s7 = inlined_call_operand.vmem [shape: bf16[256,10], index: 7, kind: input, shape index: {}]
  %s8 = inlined_call_operand.vmem [shape: f32[1,10], index: 8, kind: input, shape index: {}]
  %s9 = inlined_call_operand.hbm [shape: f32[8,10], index: 9, kind: output, shape index: {}]
  %s10 = sld [smem:[#allocation0]]
  $region58: #{mlp_forward.1} parent=0
    _
  %s12 = ssub.s32 1, %s10
  %s13 = scalar_select 0, %s12, %s10
  $region1: #{mlp_forward.1} parent=0
    #allocation2 [shape = 'u8[4096]{0}', space=vmem, size = 0x1000, scoped, tag = 'input window, operand 1, single buffered']
    #allocation3 [shape = 's32[1]{0}', space=sflag, size = 0x4, scoped, tag = 'scoped memory for mlp_forward.1']
    #allocation4 [shape = 's32[1]{0}', space=sflag, size = 0x4, scoped, tag = 'scoped memory for mlp_forward.1']
    #allocation5 [shape = 'u8[512]{0}', space=vmem, size = 0x400, scoped, tag = 'input window, operand 2, single buffered']
    #allocation6 [shape = 's32[1]{0}', space=sflag, size = 0x4, scoped, tag = 'scoped memory for mlp_forward.1']
    #allocation7 [shape = 'u8[512]{0}', space=vmem, size = 0x400, scoped, tag = 'input window, operand 4, single buffered']
    #allocation8 [shape = 'u8[4096]{0}', space=vmem, size = 0x1000, scoped, tag = 'output window, operand 0, single buffered']
    %14 = vsyncpa [#allocation3], 0
    %15 = vsyncpa [#allocation6], 0
    %16 = vsyncpa [#allocation4], 0
    // Predicated region
    $region2: #{mlp_forward.1} parent=1 // pred_check
      _
    $region3: #{mlp_forward.1} parent=1 // pred_check_branch
      %18 = sbr.rel (0) target = $region5
    $region4: #{mlp_forward.1} parent=1 // pred_region
      _
    $region5: #{mlp_forward.1} parent=1 // pred_fallthru
      _
    // Predicated region
    $region6: #{mlp_forward.1} parent=1 // pred_check
      _
    $region7: #{mlp_forward.1} parent=1 // pred_check_branch
      %20 = sbr.rel (0) target = $region9
    $region8: #{mlp_forward.1} parent=1 // pred_region
      %s22 = ssub.s32 128, 128
      %23 = vsyncadd [#allocation3], %s22
      %s24 = sshll.u32 [#allocation2], 4
      %s25 = int_to_ptr.vmem [resolvable:$true] %s24
      %30 = dma.hbm_to_vmem [thread:$0]  %s1, 128, %s25, [#allocation3], 64, 64, 4
    $region9: #{mlp_forward.1} parent=1 // pred_fallthru
      _
    // Predicated region
    $region10: #{mlp_forward.1} parent=1 // pred_check
      _
    $region11: #{mlp_forward.1} parent=1 // pred_check_branch
      %32 = sbr.rel (0) target = $region13
    $region12: #{mlp_forward.1} parent=1 // pred_region
      %s34 = ssub.s32 16, 16
      %35 = vsyncadd [#allocation6], %s34
      %s37 = sshll.u32 [#allocation5], 4
      %s38 = int_to_ptr.vmem [resolvable:$true] %s37
      %40 = dma.hbm_to_vmem [thread:$0]  %s2, 16, %s38, [#allocation6]
    $region13: #{mlp_forward.1} parent=1 // pred_fallthru
      _
    // Predicated region
    $region14: #{mlp_forward.1} parent=1 // pred_check
      _
    $region15: #{mlp_forward.1} parent=1 // pred_check_branch
      %42 = sbr.rel (0) target = $region17
    $region16: #{mlp_forward.1} parent=1 // pred_region
      _
    $region17: #{mlp_forward.1} parent=1 // pred_fallthru
      _
    // Predicated region
    $region18: #{mlp_forward.1} parent=1 // pred_check
      _
    $region19: #{mlp_forward.1} parent=1 // pred_check_branch
      %44 = sbr.rel (0) target = $region21
    $region20: #{mlp_forward.1} parent=1 // pred_region
      %s46 = ssub.s32 16, 16
      %47 = vsyncadd [#allocation6], %s46
      %s49 = sshll.u32 [#allocation7], 4
      %s50 = int_to_ptr.vmem [resolvable:$true] %s49
      %52 = dma.hbm_to_vmem [thread:$0]  %s4, 16, %s50, [#allocation6]
    $region21: #{mlp_forward.1} parent=1 // pred_fallthru
      _
    // Predicated region
    $region22: #{mlp_forward.1} parent=1 // pred_check
      _
    $region23: #{mlp_forward.1} parent=1 // pred_check_branch
      %54 = sbr.rel (0) target = $region25
    $region24: #{mlp_forward.1} parent=1 // pred_region
      _
    $region25: #{mlp_forward.1} parent=1 // pred_fallthru
      _
    // Predicated region
    $region26: #{mlp_forward.1} parent=1 // pred_check
      _
    $region27: #{mlp_forward.1} parent=1 // pred_check_branch
      %56 = sbr.rel (0) target = $region29
    $region28: #{mlp_forward.1} parent=1 // pred_region
      _
    $region29: #{mlp_forward.1} parent=1 // pred_fallthru
      _
    // Predicated region
    $region30: #{mlp_forward.1} parent=1 // pred_check
      _
    $region31: #{mlp_forward.1} parent=1 // pred_check_branch
      %58 = sbr.rel (0) target = $region33
    $region32: #{mlp_forward.1} parent=1 // pred_region
      _
    $region33: #{mlp_forward.1} parent=1 // pred_fallthru
      _
    // Predicated region
    $region34: #{mlp_forward.1} parent=1 // pred_check
      _
    $region35: #{mlp_forward.1} parent=1 // pred_check_branch
      %60 = sbr.rel (0) target = $region37
    $region36: #{mlp_forward.1} parent=1 // pred_region
      _
    $region37: #{mlp_forward.1} parent=1 // pred_fallthru
      _
    // Predicated region
    $region38: #{mlp_forward.1} parent=1 // pred_check
      _
    $region39: #{mlp_forward.1} parent=1 // pred_check_branch
      %62 = sbr.rel (0) target = $region41
    $region40: #{mlp_forward.1} parent=1 // pred_region
      %63 = dma.done [#allocation3], 128
    $region41: #{mlp_forward.1} parent=1 // pred_fallthru
      _
    // Predicated region
    $region42: #{mlp_forward.1} parent=1 // pred_check
      _
    $region43: #{mlp_forward.1} parent=1 // pred_check_branch
      %65 = sbr.rel (0) target = $region45
    $region44: #{mlp_forward.1} parent=1 // pred_region
      %66 = dma.done [#allocation6], 16
    $region45: #{mlp_forward.1} parent=1 // pred_fallthru
      _
    // Predicated region
    $region46: #{mlp_forward.1} parent=1 // pred_check
      _
    $region47: #{mlp_forward.1} parent=1 // pred_check_branch
      %68 = sbr.rel (0) target = $region49
    $region48: #{mlp_forward.1} parent=1 // pred_region
      %69 = dma.done [#allocation6], 16
    $region49: #{mlp_forward.1} parent=1 // pred_fallthru
      _
    %v71 = vld [vmem:[%s0] sm:$0xff]
    %v72 = vpack.c.bf16 %v71, %v71
    %v73 = vld [vmem:[#allocation2] sm:$0xf]
    %v74 = vld [vmem:[#allocation2 + $0x4] sm:$0xf]
    %v75 = vld [vmem:[#allocation5] sm:$0x1]
    %v77 = vlaneseq
    %v78 = vshrl.u32 %v77, 7
    %v79 = vsub.s32 0, %v78
    %v80 = vrot.slane %v75, %v79
    %v84 = vunpack.c.l.b16 %v73
    %v85 = vunpack.c.l.b16 %v74
    %v86 = vpack.c.b16 %v85, %v84
    %vm88 = vcmask 130048
    %v90 = vsel %vm88, %v72, 0
    %92 = vmatprep.subr.bf16.mxu0 0
    %93 = vmatpush1.bf16.msra.mxu0 %v86
    %94 = vmatprep.subr.bf16.mxu0 0
    %95 = vmatpush1.bf16.msra.mxu0 0
    %96 = vmatprep.subr.bf16.mxu0 0
    %97 = vmatpush1.bf16.msra.mxu0 0
    %98 = vmatprep.subr.bf16.mxu0 0
    %99 = vmatpush1.bf16.msra.mxu0 0
    %100 = vmatprep.subr.bf16.mxu0 0
    %101 = vmatpush1.bf16.msra.mxu0 0
    %102 = vmatprep.subr.bf16.mxu0 0
    %103 = vmatpush1.bf16.msra.mxu0 0
    %104 = vmatprep.subr.bf16.mxu0 0
    %105 = vmatpush1.bf16.msra.mxu0 0
    %106 = vmatprep.subr.bf16.mxu0 0
    %107 = vmatpush1.bf16.msra.mxu0 0
    %108 = vmatprep.subr.bf16.mxu0 0
    %109 = vmatpush1.bf16.msra.mxu0 0
    %110 = vmatprep.subr.bf16.mxu0 0
    %111 = vmatpush1.bf16.msra.mxu0 0
    %112 = vmatprep.subr.bf16.mxu0 0
    %113 = vmatpush1.bf16.msra.mxu0 0
    %114 = vmatprep.subr.bf16.mxu0 0
    %115 = vmatpush1.bf16.msra.mxu0 0
    %116 = vmatprep.subr.bf16.mxu0 0
    %117 = vmatpush1.bf16.msra.mxu0 0
    %118 = vmatprep.subr.bf16.mxu0 0
    %119 = vmatpush1.bf16.msra.mxu0 0
    %120 = vmatprep.subr.bf16.mxu0 0
    %121 = vmatpush1.bf16.msra.mxu0 0
    %122 = vmatprep.subr.bf16.mxu0 0
    %123 = vmatpush1.bf16.msra.mxu0 0
    %124 = vmatprep.mubr.bf16.mxu0 0
    %125 = vmatmul.mubr.bf16.gmra.mrb[0].mxu0 %v90
    %v126 = vpop.f32.mrb[0].mxu0
    %v127 = vadd.f32 %v80, %v126
    %v128 = vpop.f32.mrb[0].mxu0
    %v129 = vpop.f32.mrb[0].mxu0
    %v130 = vpop.f32.mrb[0].mxu0
    %131 = vdwg.mxu0
    %v132 = vmax.f32 %v127, 0.0
    %v133 = vpack.c.bf16 %v132, %v132
    %v134 = vld [vmem:[%s3] sm:$0xf]
    %v135 = vld [vmem:[%s3 + $0x4] sm:$0xf]
    %v136 = vld [vmem:[%s3 + $0x8] sm:$0xf]
    %v137 = vld [vmem:[%s3 + $0xc] sm:$0xf]
    %v138 = vld [vmem:[#allocation7] sm:$0x1]
    %v140 = vlaneseq
    %v141 = vshrl.u32 %v140, 7
    %v142 = vsub.s32 0, %v141
    %v143 = vrot.slane %v138, %v142
    %v149 = vunpack.c.l.b16 %v134
    %v150 = vunpack.c.l.b16 %v135
    %v151 = vunpack.c.l.b16 %v136
    %v152 = vunpack.c.l.b16 %v137
    %v153 = vpack.c.b16 %v150, %v149
    %v154 = vpack.c.b16 %v152, %v151
    %vm157 = vcmask 261120
    %v159 = vsel %vm157, %v133, 0
    %161 = vmatprep.subr.bf16.mxu0 0
    %162 = vmatpush1.bf16.msra.mxu0 %v153
    %163 = vmatprep.subr.bf16.mxu0 0
    %164 = vmatpush1.bf16.msra.mxu0 %v154
    %165 = vmatprep.subr.bf16.mxu0 0
    %166 = vmatpush1.bf16.msra.mxu0 0
    %167 = vmatprep.subr.bf16.mxu0 0
    %168 = vmatpush1.bf16.msra.mxu0 0
    %169 = vmatprep.subr.bf16.mxu0 0
    %170 = vmatpush1.bf16.msra.mxu0 0
    %171 = vmatprep.subr.bf16.mxu0 0
    %172 = vmatpush1.bf16.msra.mxu0 0
    %173 = vmatprep.subr.bf16.mxu0 0
    %174 = vmatpush1.bf16.msra.mxu0 0
    %175 = vmatprep.subr.bf16.mxu0 0
    %176 = vmatpush1.bf16.msra.mxu0 0
    %177 = vmatprep.subr.bf16.mxu0 0
    %178 = vmatpush1.bf16.msra.mxu0 0
    %179 = vmatprep.subr.bf16.mxu0 0
    %180 = vmatpush1.bf16.msra.mxu0 0
    %181 = vmatprep.subr.bf16.mxu0 0
    %182 = vmatpush1.bf16.msra.mxu0 0
    %183 = vmatprep.subr.bf16.mxu0 0
    %184 = vmatpush1.bf16.msra.mxu0 0
    %185 = vmatprep.subr.bf16.mxu0 0
    %186 = vmatpush1.bf16.msra.mxu0 0
    %187 = vmatprep.subr.bf16.mxu0 0
    %188 = vmatpush1.bf16.msra.mxu0 0
    %189 = vmatprep.subr.bf16.mxu0 0
    %190 = vmatpush1.bf16.msra.mxu0 0
    %191 = vmatprep.subr.bf16.mxu0 0
    %192 = vmatpush1.bf16.msra.mxu0 0
    %193 = vmatprep.mubr.bf16.mxu0 0
    %194 = vmatmul.mubr.bf16.gmra.mrb[0].mxu0 %v159
    %v195 = vpop.f32.mrb[0].mxu0
    %v196 = vadd.f32 %v143, %v195
    %v197 = vpop.f32.mrb[0].mxu0
    %v198 = vpop.f32.mrb[0].mxu0
    %v199 = vpop.f32.mrb[0].mxu0
    %200 = vdwg.mxu0
    %v201 = vmax.f32 %v196, 0.0
    %v202 = vpack.c.bf16 %v201, %v201
    %v203 = vld [vmem:[%s5] sm:$0xff]
    %v204 = vld [vmem:[%s5 + $0x8] sm:$0xff]
    %v205 = vld [vmem:[%s5 + $0x10] sm:$0xff]
    %v206 = vld [vmem:[%s5 + $0x18] sm:$0xff]
    %v207 = vld [vmem:[%s5 + $0x20] sm:$0xff]
    %v208 = vld [vmem:[%s5 + $0x28] sm:$0xff]
    %v209 = vld [vmem:[%s5 + $0x30] sm:$0xff]
    %v210 = vld [vmem:[%s5 + $0x38] sm:$0xff]
    %v211 = vld [vmem:[%s5 + $0x40] sm:$0xff]
    %v212 = vld [vmem:[%s5 + $0x48] sm:$0xff]
    %v213 = vld [vmem:[%s5 + $0x50] sm:$0xff]
    %v214 = vld [vmem:[%s5 + $0x58] sm:$0xff]
    %v215 = vld [vmem:[%s5 + $0x60] sm:$0xff]
    %v216 = vld [vmem:[%s5 + $0x68] sm:$0xff]
    %v217 = vld [vmem:[%s5 + $0x70] sm:$0xff]
    %v218 = vld [vmem:[%s5 + $0x78] sm:$0xff]
    %v219 = vld [vmem:[%s6] sm:$0x3]
    %v221 = vlaneseq
    %v222 = vshrl.u32 %v221, 7
    %v223 = vsub.s32 0, %v222
    %v224 = vrot.slane %v219, %v223
    %v225 = vlaneseq
    %v226 = vshrl.u32 %v225, 7
    %v227 = vsub.s32 1, %v226
    %v228 = vrot.slane %v219, %v227
    %v247 = vunpack.c.l.b16 %v203
    %v248 = vunpack.c.h.b16 %v203
    %v249 = vunpack.c.l.b16 %v204
    %v250 = vunpack.c.h.b16 %v204
    %v251 = vunpack.c.l.b16 %v205
    %v252 = vunpack.c.h.b16 %v205
    %v253 = vunpack.c.l.b16 %v206
    %v254 = vunpack.c.h.b16 %v206
    %v255 = vunpack.c.l.b16 %v207
    %v256 = vunpack.c.h.b16 %v207
    %v257 = vunpack.c.l.b16 %v208
    %v258 = vunpack.c.h.b16 %v208
    %v259 = vunpack.c.l.b16 %v209
    %v260 = vunpack.c.h.b16 %v209
    %v261 = vunpack.c.l.b16 %v210
    %v262 = vunpack.c.h.b16 %v210
    %v263 = vunpack.c.l.b16 %v211
    %v264 = vunpack.c.h.b16 %v211
    %v265 = vunpack.c.l.b16 %v212
    %v266 = vunpack.c.h.b16 %v212
    %v267 = vunpack.c.l.b16 %v213
    %v268 = vunpack.c.h.b16 %v213
    %v269 = vunpack.c.l.b16 %v214
    %v270 = vunpack.c.h.b16 %v214
    %v271 = vunpack.c.l.b16 %v215
    %v272 = vunpack.c.h.b16 %v215
    %v273 = vunpack.c.l.b16 %v216
    %v274 = vunpack.c.h.b16 %v216
    %v275 = vunpack.c.l.b16 %v217
    %v276 = vunpack.c.h.b16 %v217
    %v277 = vunpack.c.l.b16 %v218
    %v278 = vunpack.c.h.b16 %v218
    %v279 = vpack.c.b16 %v249, %v247
    %v280 = vpack.c.b16 %v250, %v248
    %v281 = vpack.c.b16 %v253, %v251
    %v282 = vpack.c.b16 %v254, %v252
    %v283 = vpack.c.b16 %v257, %v255
    %v284 = vpack.c.b16 %v258, %v256
    %v285 = vpack.c.b16 %v261, %v259
    %v286 = vpack.c.b16 %v262, %v260
    %v287 = vpack.c.b16 %v265, %v263
    %v288 = vpack.c.b16 %v266, %v264
    %v289 = vpack.c.b16 %v269, %v267
    %v290 = vpack.c.b16 %v270, %v268
    %v291 = vpack.c.b16 %v273, %v271
    %v292 = vpack.c.b16 %v274, %v272
    %v293 = vpack.c.b16 %v277, %v275
    %v294 = vpack.c.b16 %v278, %v276
    %311 = vmatprep.subr.bf16.mxu0 %v280
    %312 = vmatpush1.bf16.msra.mxu0 %v279
    %313 = vmatprep.subr.bf16.mxu0 %v282
    %314 = vmatpush1.bf16.msra.mxu0 %v281
    %315 = vmatprep.subr.bf16.mxu0 %v284
    %316 = vmatpush1.bf16.msra.mxu0 %v283
    %317 = vmatprep.subr.bf16.mxu0 %v286
    %318 = vmatpush1.bf16.msra.mxu0 %v285
    %319 = vmatprep.subr.bf16.mxu0 %v288
    %320 = vmatpush1.bf16.msra.mxu0 %v287
    %321 = vmatprep.subr.bf16.mxu0 %v290
    %322 = vmatpush1.bf16.msra.mxu0 %v289
    %323 = vmatprep.subr.bf16.mxu0 %v292
    %324 = vmatpush1.bf16.msra.mxu0 %v291
    %325 = vmatprep.subr.bf16.mxu0 %v294
    %326 = vmatpush1.bf16.msra.mxu0 %v293
    %327 = vmatprep.subr.bf16.mxu0 0
    %328 = vmatpush1.bf16.msra.mxu0 0
    %329 = vmatprep.subr.bf16.mxu0 0
    %330 = vmatpush1.bf16.msra.mxu0 0
    %331 = vmatprep.subr.bf16.mxu0 0
    %332 = vmatpush1.bf16.msra.mxu0 0
    %333 = vmatprep.subr.bf16.mxu0 0
    %334 = vmatpush1.bf16.msra.mxu0 0
    %335 = vmatprep.subr.bf16.mxu0 0
    %336 = vmatpush1.bf16.msra.mxu0 0
    %337 = vmatprep.subr.bf16.mxu0 0
    %338 = vmatpush1.bf16.msra.mxu0 0
    %339 = vmatprep.subr.bf16.mxu0 0
    %340 = vmatpush1.bf16.msra.mxu0 0
    %341 = vmatprep.subr.bf16.mxu0 0
    %342 = vmatpush1.bf16.msra.mxu0 0
    %343 = vmatprep.mubr.bf16.mxu0 0
    %344 = vmatmul.mubr.bf16.gmra.mrb[0].mxu0 %v202
    %v345 = vpop.f32.mrb[0].mxu0
    %v346 = vadd.f32 %v224, %v345
    %v347 = vpop.f32.mrb[0].mxu0
    %v348 = vadd.f32 %v228, %v347
    %v349 = vpop.f32.mrb[0].mxu0
    %v350 = vpop.f32.mrb[0].mxu0
    %351 = vdwg.mxu0
    %v352 = vmax.f32 %v346, 0.0
    %v353 = vmax.f32 %v348, 0.0
    %v354 = vpack.c.bf16 %v352, %v352
    %v355 = vpack.c.bf16 %v353, %v353
    %v356 = vld [vmem:[%s7] sm:$0xf]
    %v357 = vld [vmem:[%s7 + $0x4] sm:$0xf]
    %v358 = vld [vmem:[%s7 + $0x8] sm:$0xf]
    %v359 = vld [vmem:[%s7 + $0xc] sm:$0xf]
    %v360 = vld [vmem:[%s7 + $0x10] sm:$0xf]
    %v361 = vld [vmem:[%s7 + $0x14] sm:$0xf]
    %v362 = vld [vmem:[%s7 + $0x18] sm:$0xf]
    %v363 = vld [vmem:[%s7 + $0x1c] sm:$0xf]
    %v364 = vld [vmem:[%s7 + $0x20] sm:$0xf]
    %v365 = vld [vmem:[%s7 + $0x24] sm:$0xf]
    %v366 = vld [vmem:[%s7 + $0x28] sm:$0xf]
    %v367 = vld [vmem:[%s7 + $0x2c] sm:$0xf]
    %v368 = vld [vmem:[%s7 + $0x30] sm:$0xf]
    %v369 = vld [vmem:[%s7 + $0x34] sm:$0xf]
    %v370 = vld [vmem:[%s7 + $0x38] sm:$0xf]
    %v371 = vld [vmem:[%s7 + $0x3c] sm:$0xf]
    %v372 = vld [vmem:[%s7 + $0x40] sm:$0xf]
    %v373 = vld [vmem:[%s7 + $0x44] sm:$0xf]
    %v374 = vld [vmem:[%s7 + $0x48] sm:$0xf]
    %v375 = vld [vmem:[%s7 + $0x4c] sm:$0xf]
    %v376 = vld [vmem:[%s7 + $0x50] sm:$0xf]
    %v377 = vld [vmem:[%s7 + $0x54] sm:$0xf]
    %v378 = vld [vmem:[%s7 + $0x58] sm:$0xf]
    %v379 = vld [vmem:[%s7 + $0x5c] sm:$0xf]
    %v380 = vld [vmem:[%s7 + $0x60] sm:$0xf]
    %v381 = vld [vmem:[%s7 + $0x64] sm:$0xf]
    %v382 = vld [vmem:[%s7 + $0x68] sm:$0xf]
    %v383 = vld [vmem:[%s7 + $0x6c] sm:$0xf]
    %v384 = vld [vmem:[%s7 + $0x70] sm:$0xf]
    %v385 = vld [vmem:[%s7 + $0x74] sm:$0xf]
    %v386 = vld [vmem:[%s7 + $0x78] sm:$0xf]
    %v387 = vld [vmem:[%s7 + $0x7c] sm:$0xf]
    %v388 = vld [vmem:[%s8] sm:$0x1]
    %v390 = vlaneseq
    %v391 = vshrl.u32 %v390, 7
    %v392 = vsub.s32 0, %v391
    %v393 = vrot.slane %v388, %v392
    %v427 = vunpack.c.l.b16 %v356
    %v428 = vunpack.c.l.b16 %v357
    %v429 = vunpack.c.l.b16 %v358
    %v430 = vunpack.c.l.b16 %v359
    %v431 = vunpack.c.l.b16 %v360
    %v432 = vunpack.c.l.b16 %v361
    %v433 = vunpack.c.l.b16 %v362
    %v434 = vunpack.c.l.b16 %v363
    %v435 = vunpack.c.l.b16 %v364
    %v436 = vunpack.c.l.b16 %v365
    %v437 = vunpack.c.l.b16 %v366
    %v438 = vunpack.c.l.b16 %v367
    %v439 = vunpack.c.l.b16 %v368
    %v440 = vunpack.c.l.b16 %v369
    %v441 = vunpack.c.l.b16 %v370
    %v442 = vunpack.c.l.b16 %v371
    %v443 = vunpack.c.l.b16 %v372
    %v444 = vunpack.c.l.b16 %v373
    %v445 = vunpack.c.l.b16 %v374
    %v446 = vunpack.c.l.b16 %v375
    %v447 = vunpack.c.l.b16 %v376
    %v448 = vunpack.c.l.b16 %v377
    %v449 = vunpack.c.l.b16 %v378
    %v450 = vunpack.c.l.b16 %v379
    %v451 = vunpack.c.l.b16 %v380
    %v452 = vunpack.c.l.b16 %v381
    %v453 = vunpack.c.l.b16 %v382
    %v454 = vunpack.c.l.b16 %v383
    %v455 = vunpack.c.l.b16 %v384
    %v456 = vunpack.c.l.b16 %v385
    %v457 = vunpack.c.l.b16 %v386
    %v458 = vunpack.c.l.b16 %v387
    %v459 = vpack.c.b16 %v428, %v427
    %v460 = vpack.c.b16 %v430, %v429
    %v461 = vpack.c.b16 %v432, %v431
    %v462 = vpack.c.b16 %v434, %v433
    %v463 = vpack.c.b16 %v436, %v435
    %v464 = vpack.c.b16 %v438, %v437
    %v465 = vpack.c.b16 %v440, %v439
    %v466 = vpack.c.b16 %v442, %v441
    %v467 = vpack.c.b16 %v444, %v443
    %v468 = vpack.c.b16 %v446, %v445
    %v469 = vpack.c.b16 %v448, %v447
    %v470 = vpack.c.b16 %v450, %v449
    %v471 = vpack.c.b16 %v452, %v451
    %v472 = vpack.c.b16 %v454, %v453
    %v473 = vpack.c.b16 %v456, %v455
    %v474 = vpack.c.b16 %v458, %v457
    %491 = vmatprep.subr.bf16.mxu0 0
    %492 = vmatpush1.bf16.msra.mxu0 %v459
    %493 = vmatprep.subr.bf16.mxu0 0
    %494 = vmatpush1.bf16.msra.mxu0 %v460
    %495 = vmatprep.subr.bf16.mxu0 0
    %496 = vmatpush1.bf16.msra.mxu0 %v461
    %497 = vmatprep.subr.bf16.mxu0 0
    %498 = vmatpush1.bf16.msra.mxu0 %v462
    %499 = vmatprep.subr.bf16.mxu0 0
    %500 = vmatpush1.bf16.msra.mxu0 %v463
    %501 = vmatprep.subr.bf16.mxu0 0
    %502 = vmatpush1.bf16.msra.mxu0 %v464
    %503 = vmatprep.subr.bf16.mxu0 0
    %504 = vmatpush1.bf16.msra.mxu0 %v465
    %505 = vmatprep.subr.bf16.mxu0 0
    %506 = vmatpush1.bf16.msra.mxu0 %v466
    %507 = vmatprep.subr.bf16.mxu0 0
    %508 = vmatpush1.bf16.msra.mxu0 %v467
    %509 = vmatprep.subr.bf16.mxu0 0
    %510 = vmatpush1.bf16.msra.mxu0 %v468
    %511 = vmatprep.subr.bf16.mxu0 0
    %512 = vmatpush1.bf16.msra.mxu0 %v469
    %513 = vmatprep.subr.bf16.mxu0 0
    %514 = vmatpush1.bf16.msra.mxu0 %v470
    %515 = vmatprep.subr.bf16.mxu0 0
    %516 = vmatpush1.bf16.msra.mxu0 %v471
    %517 = vmatprep.subr.bf16.mxu0 0
    %518 = vmatpush1.bf16.msra.mxu0 %v472
    %519 = vmatprep.subr.bf16.mxu0 0
    %520 = vmatpush1.bf16.msra.mxu0 %v473
    %521 = vmatprep.subr.bf16.mxu0 0
    %522 = vmatpush1.bf16.msra.mxu0 %v474
    %523 = vmatprep.mubr.bf16.mxu0 %v355
    %524 = vmatmul.mubr.bf16.gmra.mrb[0].mxu0 %v354
    %v525 = vpop.f32.mrb[0].mxu0
    %v526 = vadd.f32 %v393, %v525
    %v527 = vpop.f32.mrb[0].mxu0
    %v528 = vpop.f32.mrb[0].mxu0
    %v529 = vpop.f32.mrb[0].mxu0
    %530 = vdwg.mxu0
    %vm531 = vcmask 80896
    %532 = vst.msk [vmem:[#allocation8] sm:$0xff] %vm531, %v526
    // Predicated region
    $region50: #{mlp_forward.1} parent=1 // pred_check
      _
    $region51: #{mlp_forward.1} parent=1 // pred_check_branch
      %534 = sbr.rel (0) target = $region53
    $region52: #{mlp_forward.1} parent=1 // pred_region
      %s536 = ssub.s32 128, 128
      %537 = vsyncadd [#allocation4], %s536
      %s539 = sshll.u32 [#allocation8], 4
      %s540 = int_to_ptr.vmem [resolvable:$true] %s539
      %542 = dma.vmem_to_hbm [thread:$0]  %s540, 128, %s9, [#allocation4]
    $region53: #{mlp_forward.1} parent=1 // pred_fallthru
      _
    // Predicated region
    $region54: #{mlp_forward.1} parent=1 // pred_check
      _
    $region55: #{mlp_forward.1} parent=1 // pred_check_branch
      %544 = sbr.rel (0) target = $region57
    $region56: #{mlp_forward.1} parent=1 // pred_region
      %545 = dma.done [#allocation4], 128
    $region57: #{mlp_forward.1} parent=1 // pred_fallthru
      _
    %546 = vsyncpa [#allocation3], 1
    %547 = vsyncpa [#allocation6], 1
    %548 = vsyncpa [#allocation4], 1

</llo_original>
